<compile_context>
chip_gen: v5e
topology: v5e:2x2
jax: 0.10.0
libtpu: 0.0.40
codegen_flags: <defaults>
</compile_context>

<pallas_src>
import functools

import jax
import jax.numpy as jnp
from jax.experimental import pallas as pl
from jax.experimental.pallas import tpu as pltpu

_LANES = 128


def _round_up(x, m):
    return ((x + m - 1) // m) * m


# ----------------------------------------------------------------------------
# Kernels.  Inputs are (F, TB) f32 tiles (batch on lanes); outputs (1, TB).
# ----------------------------------------------------------------------------
def _pairmf_ctx_kernel(eu_ref, ei_ref, ej_ref, ec_ref, pi_ref, pj_ref):
    uc = eu_ref[...] * ec_ref[...]                      # emb[u] * emb[c]
    pi_ref[...] = jnp.sum(uc * ei_ref[...], axis=0, keepdims=True)
    pj_ref[...] = jnp.sum(uc * ej_ref[...], axis=0, keepdims=True)


def _pairmf_noctx_kernel(eu_ref, ei_ref, ej_ref, pi_ref, pj_ref):
    eu = eu_ref[...]
    pi_ref[...] = jnp.sum(eu * ei_ref[...], axis=0, keepdims=True)
    pj_ref[...] = jnp.sum(eu * ej_ref[...], axis=0, keepdims=True)


def _call_pairmf(kernel, tiles, tb):
    """tiles: tuple of (F, Bp) f32 arrays with Bp % tb == 0."""
    F, Bp = tiles[0].shape
    grid = (Bp // tb,)
    in_spec = pl.BlockSpec((F, tb), lambda b: (0, b))
    out_spec = pl.BlockSpec((1, tb), lambda b: (0, b))
    return pl.pallas_call(
        kernel,
        out_shape=(
            jax.ShapeDtypeStruct((1, Bp), jnp.float32),
            jax.ShapeDtypeStruct((1, Bp), jnp.float32),
        ),
        grid_spec=pl.GridSpec(
            grid=grid,
            in_specs=[in_spec] * len(tiles),
            out_specs=[out_spec, out_spec],
        ),
        compiler_params=pltpu.CompilerParams(
            dimension_semantics=("parallel",),  # megacore-shardable on v7x
        ),
    )(*tiles)


# ----------------------------------------------------------------------------
# Jitted wrappers: pad batch to a tile multiple, transpose to lane-dense
# (F, Bp) layout, run the kernel, slice back to (B,).
# ----------------------------------------------------------------------------
@functools.partial(jax.jit, static_argnames=("tb",))
def _pairmf_scores_ctx(e_u, e_i, e_j, e_c, *, tb):
    B = e_u.shape[0]
    Bp = _round_up(B, tb)

    def prep(x):                                        # (B, F) -> (F, Bp)
        if Bp != B:
            x = jnp.pad(x, ((0, Bp - B), (0, 0)))
        return x.T

    pi, pj = _call_pairmf(
        _pairmf_ctx_kernel, (prep(e_u), prep(e_i), prep(e_j), prep(e_c)), tb)
    return pi[0, :B], pj[0, :B]


@functools.partial(jax.jit, static_argnames=("tb",))
def _pairmf_scores_noctx(e_u, e_i, e_j, *, tb):
    B = e_u.shape[0]
    Bp = _round_up(B, tb)

    def prep(x):
        if Bp != B:
            x = jnp.pad(x, ((0, Bp - B), (0, 0)))
        return x.T

    pi, pj = _call_pairmf(
        _pairmf_noctx_kernel, (prep(e_u), prep(e_i), prep(e_j)), tb)
    return pi[0, :B], pj[0, :B]


# ----------------------------------------------------------------------------
# Module wrapper.
# ----------------------------------------------------------------------------
class PairMFPallas:
    """JAX/Pallas re-implementation of PairMF.forward (non-GCE branch)."""

    def __init__(self, max_dim, factors=32, key=None, tile_batch=1024):
        if key is None:
            key = jax.random.PRNGKey(0)
        # nn.init.normal_(weight, std=0.01), deterministic.
        self.weight = (0.01 * jax.random.normal(
            key, (max_dim, factors), dtype=jnp.float32))
        self.factors = factors
        self.tile_batch = int(tile_batch)

    def _tb(self, batch):
        # Largest lane-dense tile (multiple of 128) covering the batch, capped
        # at tile_batch so big batches still get >=2 grid steps (v7x megacore).
        return min(self.tile_batch, _round_up(max(int(batch), 1), _LANES))

    def forward(self, u, i, j, context=None):
        # Embedding lookup (plain-JAX glue; hot path runs in Pallas).
        e_u = jnp.take(self.weight, u, axis=0)
        e_i = jnp.take(self.weight, i, axis=0)
        e_j = jnp.take(self.weight, j, axis=0)
        tb = self._tb(u.shape[0])
        if context is None:
            return _pairmf_scores_noctx(e_u, e_i, e_j, tb=tb)
        e_c = jnp.take(self.weight, context, axis=0)
        return _pairmf_scores_ctx(e_u, e_i, e_j, e_c, tb=tb)

    def predict(self, u, i, c=None):
        pred_i, _ = self.forward(u, i, i, c)
        return pred_i


if __name__ == "__main__":
    key = jax.random.PRNGKey(0)
    k_emb = jax.random.fold_in(key, 12345)

    max_dim = 64
    factors = 32

    model = PairMFPallas(max_dim=max_dim, factors=factors, key=k_emb)
    W = model.weight

    # Small batch (8) plus a non-multiple-of-128 batch (133) to exercise the
    # padding / partial-tile path.
    for batch in (8, 133):
        kb = jax.random.fold_in(key, batch)
        k_u, k_i, k_j, k_c = jax.random.split(kb, 4)
        u = jax.random.randint(k_u, (batch,), 0, max_dim)
        i = jax.random.randint(k_i, (batch,), 0, max_dim)
        j = jax.random.randint(k_j, (batch,), 0, max_dim)
        context = jax.random.randint(k_c, (batch,), 0, max_dim)

        # With context
        pred_i, pred_j = model.forward(u, i, j, context)
        # Without context
        pred_i_nc, pred_j_nc = model.forward(u, i, j, None)
        jax.block_until_ready((pred_i, pred_j, pred_i_nc, pred_j_nc))

        # Reference check (pure JAX).
        ref_i = jnp.sum(W[u] * W[i] * W[context], axis=-1)
        ref_j = jnp.sum(W[u] * W[j] * W[context], axis=-1)
        ref_i_nc = jnp.sum(W[u] * W[i], axis=-1)
        ref_j_nc = jnp.sum(W[u] * W[j], axis=-1)

        assert pred_i.shape == (batch,) and pred_j.shape == (batch,)
        assert jnp.allclose(pred_i, ref_i, atol=1e-6)
        assert jnp.allclose(pred_j, ref_j, atol=1e-6)
        assert jnp.allclose(pred_i_nc, ref_i_nc, atol=1e-6)
        assert jnp.allclose(pred_j_nc, ref_j_nc, atol=1e-6)

        # predict() path
        p = model.predict(u, i, context)
        jax.block_until_ready(p)
        assert jnp.allclose(p, ref_i, atol=1e-6)

    print("KERNEL_OK")
</pallas_src>

<mosaic_0001>
module attributes {stable_mosaic.version = 11 : i64} {
  func.func @_pairmf_ctx_kernel(%arg0: i32, %arg1: memref<32x128xf32, #tpu.memory_space<vmem>>, %arg2: memref<32x128xf32, #tpu.memory_space<vmem>>, %arg3: memref<32x128xf32, #tpu.memory_space<vmem>>, %arg4: memref<32x128xf32, #tpu.memory_space<vmem>>, %arg5: memref<1x128xf32, #tpu.memory_space<vmem>>, %arg6: memref<1x128xf32, #tpu.memory_space<vmem>>) attributes {dimension_semantics = [#tpu.dimension_semantics<parallel>], iteration_bounds = array<i64: 1>, scalar_prefetch = 0 : i64, scratch_operands = 0 : i64, tpu.core_type = #tpu.core_type<tc>, window_params = [{transform_indices = @transform_0, window_bounds = array<i64: 32, 128>}, {transform_indices = @transform_1, window_bounds = array<i64: 32, 128>}, {transform_indices = @transform_2, window_bounds = array<i64: 32, 128>}, {transform_indices = @transform_3, window_bounds = array<i64: 32, 128>}, {transform_indices = @transform_4, window_bounds = array<i64: 1, 128>}, {transform_indices = @transform_5, window_bounds = array<i64: 1, 128>}]} {
    %c0 = arith.constant 0 : index
    %c0_0 = arith.constant 0 : index
    %0 = vector.load %arg1[%c0, %c0_0] : memref<32x128xf32, #tpu.memory_space<vmem>>, vector<32x128xf32>
    %c0_1 = arith.constant 0 : index
    %c0_2 = arith.constant 0 : index
    %1 = vector.load %arg4[%c0_1, %c0_2] : memref<32x128xf32, #tpu.memory_space<vmem>>, vector<32x128xf32>
    %2 = arith.mulf %0, %1 : vector<32x128xf32>
    %c0_3 = arith.constant 0 : index
    %c0_4 = arith.constant 0 : index
    %3 = vector.load %arg2[%c0_3, %c0_4] : memref<32x128xf32, #tpu.memory_space<vmem>>, vector<32x128xf32>
    %4 = arith.mulf %2, %3 : vector<32x128xf32>
    %cst = arith.constant dense<0.000000e+00> : vector<128xf32>
    %5 = vector.multi_reduction <add>, %4, %cst [0] : vector<32x128xf32> to vector<128xf32>
    %6 = vector.shape_cast %5 : vector<128xf32> to vector<1x128xf32>
    %c0_5 = arith.constant 0 : index
    %c0_6 = arith.constant 0 : index
    %7 = vector.load %arg5[%c0_5, %c0_6] : memref<1x128xf32, #tpu.memory_space<vmem>>, vector<1x128xf32>
    tpu.vector_store %arg5[%c0_5, %c0_6], %6 {strides = array<i32>} : memref<1x128xf32, #tpu.memory_space<vmem>>, vector<1x128xf32>,
    %c0_7 = arith.constant 0 : index
    %c0_8 = arith.constant 0 : index
    %8 = vector.load %arg3[%c0_7, %c0_8] : memref<32x128xf32, #tpu.memory_space<vmem>>, vector<32x128xf32>
    %9 = arith.mulf %2, %8 : vector<32x128xf32>
    %cst_9 = arith.constant dense<0.000000e+00> : vector<128xf32>
    %10 = vector.multi_reduction <add>, %9, %cst_9 [0] : vector<32x128xf32> to vector<128xf32>
    %11 = vector.shape_cast %10 : vector<128xf32> to vector<1x128xf32>
    %c0_10 = arith.constant 0 : index
    %c0_11 = arith.constant 0 : index
    %12 = vector.load %arg6[%c0_10, %c0_11] : memref<1x128xf32, #tpu.memory_space<vmem>>, vector<1x128xf32>
    tpu.vector_store %arg6[%c0_10, %c0_11], %11 {strides = array<i32>} : memref<1x128xf32, #tpu.memory_space<vmem>>, vector<1x128xf32>,
    return
  }
  func.func @transform_0(%arg0: i32) -> (i32, i32) {
    %c0_i32 = arith.constant 0 : i32
    %c0_i32_0 = arith.constant 0 : i32
    return %c0_i32, %arg0 : i32, i32
  }
  func.func @transform_1(%arg0: i32) -> (i32, i32) {
    %c0_i32 = arith.constant 0 : i32
    %c0_i32_0 = arith.constant 0 : i32
    return %c0_i32, %arg0 : i32, i32
  }
  func.func @transform_2(%arg0: i32) -> (i32, i32) {
    %c0_i32 = arith.constant 0 : i32
    %c0_i32_0 = arith.constant 0 : i32
    return %c0_i32, %arg0 : i32, i32
  }
  func.func @transform_3(%arg0: i32) -> (i32, i32) {
    %c0_i32 = arith.constant 0 : i32
    %c0_i32_0 = arith.constant 0 : i32
    return %c0_i32, %arg0 : i32, i32
  }
  func.func @transform_4(%arg0: i32) -> (i32, i32) {
    %c0_i32 = arith.constant 0 : i32
    %c0_i32_0 = arith.constant 0 : i32
    return %c0_i32, %arg0 : i32, i32
  }
  func.func @transform_5(%arg0: i32) -> (i32, i32) {
    %c0_i32 = arith.constant 0 : i32
    %c0_i32_0 = arith.constant 0 : i32
    return %c0_i32, %arg0 : i32, i32
  }
}

</mosaic_0001>

<llo_original>
// kernel: _pairmf_scores_ctx.1
$region0: #{_pairmf_scores_ctx.1}
  #allocation0 [shape = 'u32[]', space=smem, size = 0x4, offset = 0x4, fixed_abs, tag = 'smem constant byte address 0x4 - core index']
  #allocation1 [shape = 'u32[72,128]{1,0:T(1,128)}', space=vmem, size = 0x9000, scoped, tag = 'internal scratch']
  %s0 = inlined_call_operand.vmem [shape: f32[32,128], index: 0, kind: input, shape index: {}]
  %s1 = inlined_call_operand.vmem [shape: f32[32,128], index: 1, kind: input, shape index: {}]
  %s2 = inlined_call_operand.vmem [shape: f32[32,128], index: 2, kind: input, shape index: {}]
  %s3 = inlined_call_operand.vmem [shape: f32[32,128], index: 3, kind: input, shape index: {}]
  %s4 = inlined_call_operand.vmem [shape: f32[1,128], index: 4, kind: output, shape index: {0}]
  %s5 = inlined_call_operand.vmem [shape: f32[1,128], index: 5, kind: output, shape index: {1}]
  %6 = xla_tuple %s4, %s5
  %s7 = sld [smem:[#allocation0]]
  $region34: #{_pairmf_scores_ctx.1} parent=0
    _
  %s9 = ssub.s32 1, %s7
  %s10 = scalar_select 0, %s9, %s7
  // Predicated region
  $region2: #{_pairmf_scores_ctx.1} parent=0 // pred_check
    _
  $region3: #{_pairmf_scores_ctx.1} parent=0 // pred_check_branch
    %12 = sbr.rel (0) target = $region5
  $region4: #{_pairmf_scores_ctx.1} parent=0 // pred_region
    _
  $region5: #{_pairmf_scores_ctx.1} parent=0 // pred_fallthru
    _
  // Predicated region
  $region6: #{_pairmf_scores_ctx.1} parent=0 // pred_check
    _
  $region7: #{_pairmf_scores_ctx.1} parent=0 // pred_check_branch
    %14 = sbr.rel (0) target = $region9
  $region8: #{_pairmf_scores_ctx.1} parent=0 // pred_region
    _
  $region9: #{_pairmf_scores_ctx.1} parent=0 // pred_fallthru
    _
  // Predicated region
  $region10: #{_pairmf_scores_ctx.1} parent=0 // pred_check
    _
  $region11: #{_pairmf_scores_ctx.1} parent=0 // pred_check_branch
    %16 = sbr.rel (0) target = $region13
  $region12: #{_pairmf_scores_ctx.1} parent=0 // pred_region
    _
  $region13: #{_pairmf_scores_ctx.1} parent=0 // pred_fallthru
    _
  // Predicated region
  $region14: #{_pairmf_scores_ctx.1} parent=0 // pred_check
    _
  $region15: #{_pairmf_scores_ctx.1} parent=0 // pred_check_branch
    %18 = sbr.rel (0) target = $region17
  $region16: #{_pairmf_scores_ctx.1} parent=0 // pred_region
    _
  $region17: #{_pairmf_scores_ctx.1} parent=0 // pred_fallthru
    _
  %v19 = vld [vmem:[%s0] sm:$0xff]
  %v20 = vld [vmem:[%s0 + $0x8] sm:$0xff]
  %v21 = vld [vmem:[%s0 + $0x10] sm:$0xff]
  %v22 = vld [vmem:[%s0 + $0x18] sm:$0xff]
  %v23 = vld [vmem:[%s3] sm:$0xff]
  %v24 = vld [vmem:[%s3 + $0x8] sm:$0xff]
  %v25 = vld [vmem:[%s3 + $0x10] sm:$0xff]
  %v26 = vld [vmem:[%s3 + $0x18] sm:$0xff]
  %v27 = vmul.f32 %v19, %v23
  %v28 = vmul.f32 %v20, %v24
  %v29 = vmul.f32 %v21, %v25
  %v30 = vmul.f32 %v22, %v26
  %v31 = vld [vmem:[%s1] sm:$0xff]
  %v32 = vld [vmem:[%s1 + $0x8] sm:$0xff]
  %v33 = vld [vmem:[%s1 + $0x10] sm:$0xff]
  %v34 = vld [vmem:[%s1 + $0x18] sm:$0xff]
  %v35 = vmul.f32 %v27, %v31
  %v36 = vmul.f32 %v28, %v32
  %v37 = vmul.f32 %v29, %v33
  %v38 = vmul.f32 %v30, %v34
  %v39 = vadd.f32 %v35, %v36
  %v40 = vadd.f32 %v39, %v37
  %v41 = vadd.f32 %v40, %v38
  %v42 = vrot.slane %v41, 4
  %v43 = vadd.f32 %v41, %v42
  %v44 = vrot.slane %v43, 2
  %v45 = vadd.f32 %v43, %v44
  %v46 = vrot.slane %v45, 1
  %v47 = vadd.f32 %v45, %v46
  %48 = vst [vmem:[%s4] sm:$0x1] %v47
  %v49 = vld [vmem:[%s2] sm:$0xff]
  %v50 = vld [vmem:[%s2 + $0x8] sm:$0xff]
  %v51 = vld [vmem:[%s2 + $0x10] sm:$0xff]
  %v52 = vld [vmem:[%s2 + $0x18] sm:$0xff]
  %v53 = vmul.f32 %v27, %v49
  %v54 = vmul.f32 %v28, %v50
  %v55 = vmul.f32 %v29, %v51
  %v56 = vmul.f32 %v30, %v52
  %v57 = vadd.f32 %v53, %v54
  %v58 = vadd.f32 %v57, %v55
  %v59 = vadd.f32 %v58, %v56
  %v60 = vrot.slane %v59, 4
  %v61 = vadd.f32 %v59, %v60
  %v62 = vrot.slane %v61, 2
  %v63 = vadd.f32 %v61, %v62
  %v64 = vrot.slane %v63, 1
  %v65 = vadd.f32 %v63, %v64
  %66 = vst [vmem:[%s5] sm:$0x1] %v65
  // Predicated region
  $region18: #{_pairmf_scores_ctx.1} parent=0 // pred_check
    _
  $region19: #{_pairmf_scores_ctx.1} parent=0 // pred_check_branch
    %68 = sbr.rel (0) target = $region21
  $region20: #{_pairmf_scores_ctx.1} parent=0 // pred_region
    _
  $region21: #{_pairmf_scores_ctx.1} parent=0 // pred_fallthru
    _
  // Predicated region
  $region22: #{_pairmf_scores_ctx.1} parent=0 // pred_check
    _
  $region23: #{_pairmf_scores_ctx.1} parent=0 // pred_check_branch
    %70 = sbr.rel (0) target = $region25
  $region24: #{_pairmf_scores_ctx.1} parent=0 // pred_region
    _
  $region25: #{_pairmf_scores_ctx.1} parent=0 // pred_fallthru
    _
  // Predicated region
  $region26: #{_pairmf_scores_ctx.1} parent=0 // pred_check
    _
  $region27: #{_pairmf_scores_ctx.1} parent=0 // pred_check_branch
    %72 = sbr.rel (0) target = $region29
  $region28: #{_pairmf_scores_ctx.1} parent=0 // pred_region
    _
  $region29: #{_pairmf_scores_ctx.1} parent=0 // pred_fallthru
    _
  // Predicated region
  $region30: #{_pairmf_scores_ctx.1} parent=0 // pred_check
    _
  $region31: #{_pairmf_scores_ctx.1} parent=0 // pred_check_branch
    %74 = sbr.rel (0) target = $region33
  $region32: #{_pairmf_scores_ctx.1} parent=0 // pred_region
    _
  $region33: #{_pairmf_scores_ctx.1} parent=0 // pred_fallthru
    _

</llo_original>
